<compile_context>
chip_gen: v7x
topology: tpu7x:2x2x1
jax: 0.10.0
libtpu: 0.0.40
codegen_flags: <defaults>
</compile_context>

<pallas_src>
import functools

import jax
import jax.numpy as jnp
from jax import lax
from jax.experimental import pallas as pl
from jax.experimental.pallas import tpu as pltpu

HIGH_CONSTANT = 2.0
TINY_CONSTANT = 1e-5
_NEG_FILL = -3.0e38   # "never beats anything" filler for positive challenger rows


def _recall_kernel(scores_ref, gt_ref, out_ref, chal_ref, *, margin, total_n, seq_len,
                   unroll_threshold):
    """Tile layout: (seq_len, lane_tile) — one sequence per lane; the ranking runs down
    the sublane (position) axis independently for every lane."""
    s = scores_ref[...]                                    # (L, T) f32
    g = gt_ref[...]                                        # (L, T) f32, 0/1
    s_adj = s - margin * (g - 0.5)

    # Challenger scores: positives can never beat anything -> only negatives counted,
    # so a single accumulator gives (rank_all - rank_pos) directly.
    chal_ref[...] = jnp.where(g > 0.5, jnp.float32(_NEG_FILL), s_adj)

    pos_idx = lax.broadcasted_iota(jnp.int32, (seq_len, 1), 0)   # (L, 1) position index

    def body(j, neg_beats):
        row = chal_ref[pl.ds(j, 1), :]                     # (1, T) — precomputed challenger
        # Negative position j "beats" position i iff strictly higher adjusted score
        # (exact ties broken in favour of the smaller position index).
        beats = (row > s_adj) | ((row == s_adj) & (j < pos_idx))   # (L, T)
        return neg_beats + beats.astype(jnp.int32)

    zeros = jnp.zeros(s.shape, jnp.int32)
    if seq_len <= unroll_threshold:
        neg_beats = zeros
        for j in range(seq_len):                           # trace-time unrolled (small L)
            neg_beats = body(j, neg_beats)
    else:
        neg_beats = lax.fori_loop(0, seq_len, body, zeros, unroll=8)

    # ranks_among_all - ranks_among_positive = neg_beats / L  (for positive entries)
    # ranks_for_queries = neg_beats * (total_n / L) * g
    # TODO(synk): torch code asserts all(ranks_for_queries > -1e-5); always true here.
    rq = neg_beats.astype(jnp.float32) * (float(total_n) / float(seq_len)) * g
    weighted = jnp.log1p(rq)                               # weight_fn = log(1 + x)
    out_ref[...] = jnp.concatenate(
        [jnp.sum(weighted, axis=0, keepdims=True),         # partial numerator per lane
         jnp.sum(g, axis=0, keepdims=True)],               # partial denominator per lane
        axis=0)


def _round_up(x, m):
    return (x + m - 1) // m * m


def _choose_lane_tile(n_seq, seq_len, requested):
    """Pick a lane tile: big enough to amortize per-step overhead, small enough that
    double-buffered inputs + live temporaries stay well inside scoped VMEM on v7x."""
    # ~9 live / buffered (L, T)-f32-equivalent slabs per tile:
    #   2 inputs x 2 pipeline buffers + s, g, s_adj, challenger scratch, i32 accumulator.
    bytes_per_lane = 9 * seq_len * 4
    budget = 16 << 20                                      # 2x headroom still <= 40 MiB
    cap = max(128, (budget // bytes_per_lane) // 128 * 128)
    tile = max(128, (min(int(requested), cap) // 128) * 128)

    n128 = _round_up(n_seq, 128)
    if n128 <= tile:
        # Small problem: single tile, but split evenly in two when possible so the
        # "parallel" grid axis can feed both v7x TensorCores.
        if n128 >= 256 and (n128 // 128) % 2 == 0:
            return n128 // 2
        return n128
    return tile


def recall_loss_pallas_t(scores_t, gt_t, *, lambda_val=1.0, margin=0.05,
                         lane_tile=1024, unroll_threshold=64):
    """Forward of RecallLoss on pre-transposed inputs of shape (seq_len, num_sequences).
    lambda_val only affects the blackbox backward pass (not implemented here)."""
    del lambda_val
    seq_len, n_seq = scores_t.shape

    scores_t = scores_t.astype(jnp.float32)
    gt_t = gt_t.astype(jnp.float32)

    lane_tile = _choose_lane_tile(n_seq, seq_len, lane_tile)
    n_padded = _round_up(n_seq, lane_tile)
    pad = n_padded - n_seq
    if pad:
        scores_t = jnp.pad(scores_t, ((0, 0), (0, pad)))
        gt_t = jnp.pad(gt_t, ((0, 0), (0, pad)))           # padded sequences: no positives
    num_tiles = n_padded // lane_tile

    kernel = functools.partial(_recall_kernel, margin=float(margin), total_n=int(n_seq),
                               seq_len=int(seq_len), unroll_threshold=int(unroll_threshold))

    # VMEM: double-buffered inputs + challenger scratch + live temporaries (est.), with
    # ~2x headroom, capped at 40 MiB so v7x (64 MiB physical) keeps scheduling headroom.
    slab = seq_len * lane_tile * 4
    vmem_est = 9 * slab + 4 * lane_tile * 4 + (256 << 10)
    vmem_limit = int(min(40 << 20, max(8 << 20, 2 * vmem_est)))

    cost = pl.CostEstimate(
        flops=5 * n_padded * seq_len * seq_len,
        transcendentals=n_padded * seq_len,
        bytes_accessed=4 * (2 * n_padded * seq_len + 2 * n_padded),
    )

    partials = pl.pallas_call(
        kernel,
        out_shape=jax.ShapeDtypeStruct((2, n_padded), jnp.float32),
        grid=(num_tiles,),
        in_specs=[
            pl.BlockSpec((seq_len, lane_tile), lambda i: (0, i)),
            pl.BlockSpec((seq_len, lane_tile), lambda i: (0, i)),
        ],
        out_specs=pl.BlockSpec((2, lane_tile), lambda i: (0, i)),
        scratch_shapes=[pltpu.VMEM((seq_len, lane_tile), jnp.float32)],
        compiler_params=pltpu.CompilerParams(
            dimension_semantics=("parallel",),
            vmem_limit_bytes=vmem_limit,
        ),
        cost_estimate=cost,
    )(scores_t, gt_t)

    numerator = jnp.sum(partials[0, :])
    denominator = jnp.sum(partials[1, :])   # NaN if no positives at all, same as torch
    return numerator / denominator


def recall_loss_pallas(score_sequences, gt_relevance_sequences, *, lambda_val=1.0,
                       margin=0.05, lane_tile=1024, unroll_threshold=64):
    """Convenience entry point taking (num_sequences, seq_len) like the torch module."""
    s_t = jnp.transpose(score_sequences.astype(jnp.float32))
    g_t = jnp.transpose(gt_relevance_sequences.astype(jnp.float32))
    return recall_loss_pallas_t(s_t, g_t, lambda_val=lambda_val, margin=margin,
                                lane_tile=lane_tile, unroll_threshold=unroll_threshold)


class BatchMemoryRecallLoss:
    """JAX/Pallas port of the torch BatchMemoryRecallLoss wrapper.

    Batch memory is stored pre-transposed (seq_len, n) and pre-cast to f32, so the
    growing history is never re-transposed / re-cast on every call."""

    def __init__(self, batch_memory, lambda_val, margin):
        self.batch_memory = batch_memory
        self.lambda_val = lambda_val
        self.margin = margin
        self.batch_storage = []    # list of (seq_len, n) f32 slabs
        self.labels_storage = []

    def reset(self):
        self.batch_storage.clear()
        self.labels_storage.clear()

    def __call__(self, score_sequences, gt_relevance_sequences):
        s_t = jnp.transpose(score_sequences.astype(jnp.float32))
        g_t = jnp.transpose(gt_relevance_sequences.astype(jnp.float32))
        if self.batch_memory > 0:
            all_s = jnp.concatenate([s_t] + self.batch_storage, axis=1)
            all_g = jnp.concatenate([g_t] + self.labels_storage, axis=1)
            result = recall_loss_pallas_t(all_s, all_g,
                                          lambda_val=self.lambda_val, margin=self.margin)
            if len(self.batch_storage) == self.batch_memory:
                self.batch_storage.pop(0)
            self.batch_storage.append(lax.stop_gradient(s_t))
            if len(self.labels_storage) == self.batch_memory:
                self.labels_storage.pop(0)
            self.labels_storage.append(lax.stop_gradient(g_t))
        else:
            result = recall_loss_pallas_t(s_t, g_t,
                                          lambda_val=self.lambda_val, margin=self.margin)
        return result


def _recall_reference(scores, gt, margin):
    """Pure-JAX reference mirroring the torch code (argsort-based, two rankings)."""
    s = scores.astype(jnp.float32)
    g = gt.astype(jnp.float32)
    length = s.shape[0]
    seq_len = s.shape[1]

    def rank_norm(x):
        r = jnp.argsort(jnp.flip(jnp.argsort(x, axis=1), axis=1), axis=1)
        return (r + 1).astype(jnp.float32) / seq_len

    s2 = s - margin * (g - 0.5)
    ra = rank_norm(s2)
    rp = rank_norm(-ra + HIGH_CONSTANT * g)
    rq = (ra - rp) * g * length
    return jnp.sum(jnp.log1p(rq * g)) / jnp.sum(g)


if __name__ == "__main__":
    key = jax.random.PRNGKey(0)
    k1, k2, k3, k4 = jax.random.split(key, 4)

    N, L = 8, 16          # num_sequences per batch, len_of_sequence
    margin = 0.05
    lambda_val = 4.0

    scores1 = jax.random.uniform(k1, (N, L), jnp.float32, minval=-1.0, maxval=1.0)
    gt1 = (jax.random.uniform(k2, (N, L)) > 0.5).at[:, 0].set(True)
    scores2 = jax.random.uniform(k3, (N, L), jnp.float32, minval=-1.0, maxval=1.0)
    gt2 = (jax.random.uniform(k4, (N, L)) > 0.5).at[:, 0].set(True)

    loss_mod = BatchMemoryRecallLoss(batch_memory=2, lambda_val=lambda_val, margin=margin)

    # First call: empty memory -> operates on the current batch only.
    out1 = loss_mod(scores1, gt1)
    jax.block_until_ready(out1)
    ref1 = _recall_reference(scores1, gt1, margin)
    assert jnp.allclose(out1, ref1, atol=1e-5, rtol=1e-5), (out1, ref1)

    # Second call: memory holds batch 1 -> kernel runs on the concatenated batches.
    out2 = loss_mod(scores2, gt2)
    jax.block_until_ready(out2)
    ref2 = _recall_reference(jnp.concatenate([scores2, scores1], axis=0),
                             jnp.concatenate([gt2, gt1], axis=0), margin)
    assert jnp.allclose(out2, ref2, atol=1e-5, rtol=1e-5), (out2, ref2)

    print("KERNEL_OK")
</pallas_src>

<mosaic_0001>
module attributes {stable_mosaic.version = 11 : i64} {
  func.func @_recall_kernel(%arg0: i32, %arg1: memref<16x128xf32, #tpu.memory_space<vmem>>, %arg2: memref<16x128xf32, #tpu.memory_space<vmem>>, %arg3: memref<2x128xf32, #tpu.memory_space<vmem>>, %arg4: memref<16x128xf32, #tpu.memory_space<vmem>>) attributes {dimension_semantics = [#tpu.dimension_semantics<parallel>], iteration_bounds = array<i64: 1>, scalar_prefetch = 0 : i64, scratch_operands = 1 : i64, tpu.core_type = #tpu.core_type<tc>, window_params = [{transform_indices = @transform_0, window_bounds = array<i64: 16, 128>}, {transform_indices = @transform_1, window_bounds = array<i64: 16, 128>}, {transform_indices = @transform_2, window_bounds = array<i64: 2, 128>}]} {
    %c0 = arith.constant 0 : index
    %c0_0 = arith.constant 0 : index
    %0 = vector.load %arg1[%c0, %c0_0] : memref<16x128xf32, #tpu.memory_space<vmem>>, vector<16x128xf32>
    %c0_1 = arith.constant 0 : index
    %c0_2 = arith.constant 0 : index
    %1 = vector.load %arg2[%c0_1, %c0_2] : memref<16x128xf32, #tpu.memory_space<vmem>>, vector<16x128xf32>
    %cst = arith.constant 5.000000e-01 : f32
    %2 = vector.broadcast %cst : f32 to vector<16x128xf32>
    %3 = arith.subf %1, %2 : vector<16x128xf32>
    %cst_3 = arith.constant 5.000000e-02 : f32
    %4 = vector.broadcast %cst_3 : f32 to vector<16x128xf32>
    %5 = arith.mulf %4, %3 : vector<16x128xf32>
    %6 = arith.subf %0, %5 : vector<16x128xf32>
    %cst_4 = arith.constant 5.000000e-01 : f32
    %7 = vector.broadcast %cst_4 : f32 to vector<16x128xf32>
    %8 = arith.cmpf ogt, %1, %7 : vector<16x128xf32>
    %cst_5 = arith.constant -3.000000e+38 : f32
    %9 = vector.broadcast %cst_5 : f32 to vector<16x128xf32>
    %10 = arith.select %8, %9, %6 : vector<16x128xi1>, vector<16x128xf32>
    %c0_6 = arith.constant 0 : index
    %c0_7 = arith.constant 0 : index
    %11 = vector.load %arg4[%c0_6, %c0_7] : memref<16x128xf32, #tpu.memory_space<vmem>>, vector<16x128xf32>
    tpu.vector_store %arg4[%c0_6, %c0_7], %10 {strides = array<i32>} : memref<16x128xf32, #tpu.memory_space<vmem>>, vector<16x128xf32>,
    %12 = tpu.iota {dimensions = array<i32: 0>} : vector<16x1xi32>
    %c0_i32 = arith.constant 0 : i32
    %13 = vector.broadcast %c0_i32 : i32 to vector<16x128xi32>
    %c0_8 = arith.constant 0 : index
    %c0_9 = arith.constant 0 : index
    %14 = vector.load %arg4[%c0_8, %c0_9] : memref<16x128xf32, #tpu.memory_space<vmem>>, vector<1x128xf32>
    %15 = vector.broadcast %14 : vector<1x128xf32> to vector<16x128xf32>
    %16 = arith.cmpf ogt, %15, %6 : vector<16x128xf32>
    %17 = vector.broadcast %14 : vector<1x128xf32> to vector<16x128xf32>
    %18 = arith.cmpf oeq, %17, %6 : vector<16x128xf32>
    %c0_i32_10 = arith.constant 0 : i32
    %19 = vector.broadcast %c0_i32_10 : i32 to vector<16x1xi32>
    %20 = arith.cmpi sgt, %12, %19 : vector<16x1xi32>
    %21 = vector.broadcast %20 : vector<16x1xi1> to vector<16x128xi1>
    %22 = arith.andi %18, %21 : vector<16x128xi1>
    %23 = arith.ori %16, %22 : vector<16x128xi1>
    %24 = arith.extui %23 : vector<16x128xi1> to vector<16x128xi32>
    %25 = arith.addi %13, %24 : vector<16x128xi32>
    %c1 = arith.constant 1 : index
    %c0_11 = arith.constant 0 : index
    %26 = vector.load %arg4[%c1, %c0_11] : memref<16x128xf32, #tpu.memory_space<vmem>>, vector<1x128xf32>
    %27 = vector.broadcast %26 : vector<1x128xf32> to vector<16x128xf32>
    %28 = arith.cmpf ogt, %27, %6 : vector<16x128xf32>
    %29 = vector.broadcast %26 : vector<1x128xf32> to vector<16x128xf32>
    %30 = arith.cmpf oeq, %29, %6 : vector<16x128xf32>
    %c1_i32 = arith.constant 1 : i32
    %31 = vector.broadcast %c1_i32 : i32 to vector<16x1xi32>
    %32 = arith.cmpi sgt, %12, %31 : vector<16x1xi32>
    %33 = vector.broadcast %32 : vector<16x1xi1> to vector<16x128xi1>
    %34 = arith.andi %30, %33 : vector<16x128xi1>
    %35 = arith.ori %28, %34 : vector<16x128xi1>
    %36 = arith.extui %35 : vector<16x128xi1> to vector<16x128xi32>
    %37 = arith.addi %25, %36 : vector<16x128xi32>
    %c2 = arith.constant 2 : index
    %c0_12 = arith.constant 0 : index
    %38 = vector.load %arg4[%c2, %c0_12] : memref<16x128xf32, #tpu.memory_space<vmem>>, vector<1x128xf32>
    %39 = vector.broadcast %38 : vector<1x128xf32> to vector<16x128xf32>
    %40 = arith.cmpf ogt, %39, %6 : vector<16x128xf32>
    %41 = vector.broadcast %38 : vector<1x128xf32> to vector<16x128xf32>
    %42 = arith.cmpf oeq, %41, %6 : vector<16x128xf32>
    %c2_i32 = arith.constant 2 : i32
    %43 = vector.broadcast %c2_i32 : i32 to vector<16x1xi32>
    %44 = arith.cmpi sgt, %12, %43 : vector<16x1xi32>
    %45 = vector.broadcast %44 : vector<16x1xi1> to vector<16x128xi1>
    %46 = arith.andi %42, %45 : vector<16x128xi1>
    %47 = arith.ori %40, %46 : vector<16x128xi1>
    %48 = arith.extui %47 : vector<16x128xi1> to vector<16x128xi32>
    %49 = arith.addi %37, %48 : vector<16x128xi32>
    %c3 = arith.constant 3 : index
    %c0_13 = arith.constant 0 : index
    %50 = vector.load %arg4[%c3, %c0_13] : memref<16x128xf32, #tpu.memory_space<vmem>>, vector<1x128xf32>
    %51 = vector.broadcast %50 : vector<1x128xf32> to vector<16x128xf32>
    %52 = arith.cmpf ogt, %51, %6 : vector<16x128xf32>
    %53 = vector.broadcast %50 : vector<1x128xf32> to vector<16x128xf32>
    %54 = arith.cmpf oeq, %53, %6 : vector<16x128xf32>
    %c3_i32 = arith.constant 3 : i32
    %55 = vector.broadcast %c3_i32 : i32 to vector<16x1xi32>
    %56 = arith.cmpi sgt, %12, %55 : vector<16x1xi32>
    %57 = vector.broadcast %56 : vector<16x1xi1> to vector<16x128xi1>
    %58 = arith.andi %54, %57 : vector<16x128xi1>
    %59 = arith.ori %52, %58 : vector<16x128xi1>
    %60 = arith.extui %59 : vector<16x128xi1> to vector<16x128xi32>
    %61 = arith.addi %49, %60 : vector<16x128xi32>
    %c4 = arith.constant 4 : index
    %c0_14 = arith.constant 0 : index
    %62 = vector.load %arg4[%c4, %c0_14] : memref<16x128xf32, #tpu.memory_space<vmem>>, vector<1x128xf32>
    %63 = vector.broadcast %62 : vector<1x128xf32> to vector<16x128xf32>
    %64 = arith.cmpf ogt, %63, %6 : vector<16x128xf32>
    %65 = vector.broadcast %62 : vector<1x128xf32> to vector<16x128xf32>
    %66 = arith.cmpf oeq, %65, %6 : vector<16x128xf32>
    %c4_i32 = arith.constant 4 : i32
    %67 = vector.broadcast %c4_i32 : i32 to vector<16x1xi32>
    %68 = arith.cmpi sgt, %12, %67 : vector<16x1xi32>
    %69 = vector.broadcast %68 : vector<16x1xi1> to vector<16x128xi1>
    %70 = arith.andi %66, %69 : vector<16x128xi1>
    %71 = arith.ori %64, %70 : vector<16x128xi1>
    %72 = arith.extui %71 : vector<16x128xi1> to vector<16x128xi32>
    %73 = arith.addi %61, %72 : vector<16x128xi32>
    %c5 = arith.constant 5 : index
    %c0_15 = arith.constant 0 : index
    %74 = vector.load %arg4[%c5, %c0_15] : memref<16x128xf32, #tpu.memory_space<vmem>>, vector<1x128xf32>
    %75 = vector.broadcast %74 : vector<1x128xf32> to vector<16x128xf32>
    %76 = arith.cmpf ogt, %75, %6 : vector<16x128xf32>
    %77 = vector.broadcast %74 : vector<1x128xf32> to vector<16x128xf32>
    %78 = arith.cmpf oeq, %77, %6 : vector<16x128xf32>
    %c5_i32 = arith.constant 5 : i32
    %79 = vector.broadcast %c5_i32 : i32 to vector<16x1xi32>
    %80 = arith.cmpi sgt, %12, %79 : vector<16x1xi32>
    %81 = vector.broadcast %80 : vector<16x1xi1> to vector<16x128xi1>
    %82 = arith.andi %78, %81 : vector<16x128xi1>
    %83 = arith.ori %76, %82 : vector<16x128xi1>
    %84 = arith.extui %83 : vector<16x128xi1> to vector<16x128xi32>
    %85 = arith.addi %73, %84 : vector<16x128xi32>
    %c6 = arith.constant 6 : index
    %c0_16 = arith.constant 0 : index
    %86 = vector.load %arg4[%c6, %c0_16] : memref<16x128xf32, #tpu.memory_space<vmem>>, vector<1x128xf32>
    %87 = vector.broadcast %86 : vector<1x128xf32> to vector<16x128xf32>
    %88 = arith.cmpf ogt, %87, %6 : vector<16x128xf32>
    %89 = vector.broadcast %86 : vector<1x128xf32> to vector<16x128xf32>
    %90 = arith.cmpf oeq, %89, %6 : vector<16x128xf32>
    %c6_i32 = arith.constant 6 : i32
    %91 = vector.broadcast %c6_i32 : i32 to vector<16x1xi32>
    %92 = arith.cmpi sgt, %12, %91 : vector<16x1xi32>
    %93 = vector.broadcast %92 : vector<16x1xi1> to vector<16x128xi1>
    %94 = arith.andi %90, %93 : vector<16x128xi1>
    %95 = arith.ori %88, %94 : vector<16x128xi1>
    %96 = arith.extui %95 : vector<16x128xi1> to vector<16x128xi32>
    %97 = arith.addi %85, %96 : vector<16x128xi32>
    %c7 = arith.constant 7 : index
    %c0_17 = arith.constant 0 : index
    %98 = vector.load %arg4[%c7, %c0_17] : memref<16x128xf32, #tpu.memory_space<vmem>>, vector<1x128xf32>
    %99 = vector.broadcast %98 : vector<1x128xf32> to vector<16x128xf32>
    %100 = arith.cmpf ogt, %99, %6 : vector<16x128xf32>
    %101 = vector.broadcast %98 : vector<1x128xf32> to vector<16x128xf32>
    %102 = arith.cmpf oeq, %101, %6 : vector<16x128xf32>
    %c7_i32 = arith.constant 7 : i32
    %103 = vector.broadcast %c7_i32 : i32 to vector<16x1xi32>
    %104 = arith.cmpi sgt, %12, %103 : vector<16x1xi32>
    %105 = vector.broadcast %104 : vector<16x1xi1> to vector<16x128xi1>
    %106 = arith.andi %102, %105 : vector<16x128xi1>
    %107 = arith.ori %100, %106 : vector<16x128xi1>
    %108 = arith.extui %107 : vector<16x128xi1> to vector<16x128xi32>
    %109 = arith.addi %97, %108 : vector<16x128xi32>
    %c8 = arith.constant 8 : index
    %c0_18 = arith.constant 0 : index
    %110 = vector.load %arg4[%c8, %c0_18] : memref<16x128xf32, #tpu.memory_space<vmem>>, vector<1x128xf32>
    %111 = vector.broadcast %110 : vector<1x128xf32> to vector<16x128xf32>
    %112 = arith.cmpf ogt, %111, %6 : vector<16x128xf32>
    %113 = vector.broadcast %110 : vector<1x128xf32> to vector<16x128xf32>
    %114 = arith.cmpf oeq, %113, %6 : vector<16x128xf32>
    %c8_i32 = arith.constant 8 : i32
    %115 = vector.broadcast %c8_i32 : i32 to vector<16x1xi32>
    %116 = arith.cmpi sgt, %12, %115 : vector<16x1xi32>
    %117 = vector.broadcast %116 : vector<16x1xi1> to vector<16x128xi1>
    %118 = arith.andi %114, %117 : vector<16x128xi1>
    %119 = arith.ori %112, %118 : vector<16x128xi1>
    %120 = arith.extui %119 : vector<16x128xi1> to vector<16x128xi32>
    %121 = arith.addi %109, %120 : vector<16x128xi32>
    %c9 = arith.constant 9 : index
    %c0_19 = arith.constant 0 : index
    %122 = vector.load %arg4[%c9, %c0_19] : memref<16x128xf32, #tpu.memory_space<vmem>>, vector<1x128xf32>
    %123 = vector.broadcast %122 : vector<1x128xf32> to vector<16x128xf32>
    %124 = arith.cmpf ogt, %123, %6 : vector<16x128xf32>
    %125 = vector.broadcast %122 : vector<1x128xf32> to vector<16x128xf32>
    %126 = arith.cmpf oeq, %125, %6 : vector<16x128xf32>
    %c9_i32 = arith.constant 9 : i32
    %127 = vector.broadcast %c9_i32 : i32 to vector<16x1xi32>
    %128 = arith.cmpi sgt, %12, %127 : vector<16x1xi32>
    %129 = vector.broadcast %128 : vector<16x1xi1> to vector<16x128xi1>
    %130 = arith.andi %126, %129 : vector<16x128xi1>
    %131 = arith.ori %124, %130 : vector<16x128xi1>
    %132 = arith.extui %131 : vector<16x128xi1> to vector<16x128xi32>
    %133 = arith.addi %121, %132 : vector<16x128xi32>
    %c10 = arith.constant 10 : index
    %c0_20 = arith.constant 0 : index
    %134 = vector.load %arg4[%c10, %c0_20] : memref<16x128xf32, #tpu.memory_space<vmem>>, vector<1x128xf32>
    %135 = vector.broadcast %134 : vector<1x128xf32> to vector<16x128xf32>
    %136 = arith.cmpf ogt, %135, %6 : vector<16x128xf32>
    %137 = vector.broadcast %134 : vector<1x128xf32> to vector<16x128xf32>
    %138 = arith.cmpf oeq, %137, %6 : vector<16x128xf32>
    %c10_i32 = arith.constant 10 : i32
    %139 = vector.broadcast %c10_i32 : i32 to vector<16x1xi32>
    %140 = arith.cmpi sgt, %12, %139 : vector<16x1xi32>
    %141 = vector.broadcast %140 : vector<16x1xi1> to vector<16x128xi1>
    %142 = arith.andi %138, %141 : vector<16x128xi1>
    %143 = arith.ori %136, %142 : vector<16x128xi1>
    %144 = arith.extui %143 : vector<16x128xi1> to vector<16x128xi32>
    %145 = arith.addi %133, %144 : vector<16x128xi32>
    %c11 = arith.constant 11 : index
    %c0_21 = arith.constant 0 : index
    %146 = vector.load %arg4[%c11, %c0_21] : memref<16x128xf32, #tpu.memory_space<vmem>>, vector<1x128xf32>
    %147 = vector.broadcast %146 : vector<1x128xf32> to vector<16x128xf32>
    %148 = arith.cmpf ogt, %147, %6 : vector<16x128xf32>
    %149 = vector.broadcast %146 : vector<1x128xf32> to vector<16x128xf32>
    %150 = arith.cmpf oeq, %149, %6 : vector<16x128xf32>
    %c11_i32 = arith.constant 11 : i32
    %151 = vector.broadcast %c11_i32 : i32 to vector<16x1xi32>
    %152 = arith.cmpi sgt, %12, %151 : vector<16x1xi32>
    %153 = vector.broadcast %152 : vector<16x1xi1> to vector<16x128xi1>
    %154 = arith.andi %150, %153 : vector<16x128xi1>
    %155 = arith.ori %148, %154 : vector<16x128xi1>
    %156 = arith.extui %155 : vector<16x128xi1> to vector<16x128xi32>
    %157 = arith.addi %145, %156 : vector<16x128xi32>
    %c12 = arith.constant 12 : index
    %c0_22 = arith.constant 0 : index
    %158 = vector.load %arg4[%c12, %c0_22] : memref<16x128xf32, #tpu.memory_space<vmem>>, vector<1x128xf32>
    %159 = vector.broadcast %158 : vector<1x128xf32> to vector<16x128xf32>
    %160 = arith.cmpf ogt, %159, %6 : vector<16x128xf32>
    %161 = vector.broadcast %158 : vector<1x128xf32> to vector<16x128xf32>
    %162 = arith.cmpf oeq, %161, %6 : vector<16x128xf32>
    %c12_i32 = arith.constant 12 : i32
    %163 = vector.broadcast %c12_i32 : i32 to vector<16x1xi32>
    %164 = arith.cmpi sgt, %12, %163 : vector<16x1xi32>
    %165 = vector.broadcast %164 : vector<16x1xi1> to vector<16x128xi1>
    %166 = arith.andi %162, %165 : vector<16x128xi1>
    %167 = arith.ori %160, %166 : vector<16x128xi1>
    %168 = arith.extui %167 : vector<16x128xi1> to vector<16x128xi32>
    %169 = arith.addi %157, %168 : vector<16x128xi32>
    %c13 = arith.constant 13 : index
    %c0_23 = arith.constant 0 : index
    %170 = vector.load %arg4[%c13, %c0_23] : memref<16x128xf32, #tpu.memory_space<vmem>>, vector<1x128xf32>
    %171 = vector.broadcast %170 : vector<1x128xf32> to vector<16x128xf32>
    %172 = arith.cmpf ogt, %171, %6 : vector<16x128xf32>
    %173 = vector.broadcast %170 : vector<1x128xf32> to vector<16x128xf32>
    %174 = arith.cmpf oeq, %173, %6 : vector<16x128xf32>
    %c13_i32 = arith.constant 13 : i32
    %175 = vector.broadcast %c13_i32 : i32 to vector<16x1xi32>
    %176 = arith.cmpi sgt, %12, %175 : vector<16x1xi32>
    %177 = vector.broadcast %176 : vector<16x1xi1> to vector<16x128xi1>
    %178 = arith.andi %174, %177 : vector<16x128xi1>
    %179 = arith.ori %172, %178 : vector<16x128xi1>
    %180 = arith.extui %179 : vector<16x128xi1> to vector<16x128xi32>
    %181 = arith.addi %169, %180 : vector<16x128xi32>
    %c14 = arith.constant 14 : index
    %c0_24 = arith.constant 0 : index
    %182 = vector.load %arg4[%c14, %c0_24] : memref<16x128xf32, #tpu.memory_space<vmem>>, vector<1x128xf32>
    %183 = vector.broadcast %182 : vector<1x128xf32> to vector<16x128xf32>
    %184 = arith.cmpf ogt, %183, %6 : vector<16x128xf32>
    %185 = vector.broadcast %182 : vector<1x128xf32> to vector<16x128xf32>
    %186 = arith.cmpf oeq, %185, %6 : vector<16x128xf32>
    %c14_i32 = arith.constant 14 : i32
    %187 = vector.broadcast %c14_i32 : i32 to vector<16x1xi32>
    %188 = arith.cmpi sgt, %12, %187 : vector<16x1xi32>
    %189 = vector.broadcast %188 : vector<16x1xi1> to vector<16x128xi1>
    %190 = arith.andi %186, %189 : vector<16x128xi1>
    %191 = arith.ori %184, %190 : vector<16x128xi1>
    %192 = arith.extui %191 : vector<16x128xi1> to vector<16x128xi32>
    %193 = arith.addi %181, %192 : vector<16x128xi32>
    %c15 = arith.constant 15 : index
    %c0_25 = arith.constant 0 : index
    %194 = vector.load %arg4[%c15, %c0_25] : memref<16x128xf32, #tpu.memory_space<vmem>>, vector<1x128xf32>
    %195 = vector.broadcast %194 : vector<1x128xf32> to vector<16x128xf32>
    %196 = arith.cmpf ogt, %195, %6 : vector<16x128xf32>
    %197 = vector.broadcast %194 : vector<1x128xf32> to vector<16x128xf32>
    %198 = arith.cmpf oeq, %197, %6 : vector<16x128xf32>
    %c15_i32 = arith.constant 15 : i32
    %199 = vector.broadcast %c15_i32 : i32 to vector<16x1xi32>
    %200 = arith.cmpi sgt, %12, %199 : vector<16x1xi32>
    %201 = vector.broadcast %200 : vector<16x1xi1> to vector<16x128xi1>
    %202 = arith.andi %198, %201 : vector<16x128xi1>
    %203 = arith.ori %196, %202 : vector<16x128xi1>
    %204 = arith.extui %203 : vector<16x128xi1> to vector<16x128xi32>
    %205 = arith.addi %193, %204 : vector<16x128xi32>
    %206 = arith.sitofp %205 : vector<16x128xi32> to vector<16x128xf32>
    %cst_26 = arith.constant 5.000000e-01 : f32
    %207 = vector.broadcast %cst_26 : f32 to vector<16x128xf32>
    %208 = arith.mulf %206, %207 : vector<16x128xf32>
    %209 = arith.mulf %208, %1 : vector<16x128xf32>
    %210 = math.log1p %209 : vector<16x128xf32>
    %cst_27 = arith.constant dense<0.000000e+00> : vector<128xf32>
    %211 = vector.multi_reduction <add>, %210, %cst_27 [0] : vector<16x128xf32> to vector<128xf32>
    %212 = vector.shape_cast %211 : vector<128xf32> to vector<1x128xf32>
    %cst_28 = arith.constant dense<0.000000e+00> : vector<128xf32>
    %213 = vector.multi_reduction <add>, %1, %cst_28 [0] : vector<16x128xf32> to vector<128xf32>
    %214 = vector.shape_cast %213 : vector<128xf32> to vector<1x128xf32>
    %215 = tpu.concatenate %212, %214 in 0 : vector<1x128xf32>, vector<1x128xf32> -> vector<2x128xf32>
    %c0_29 = arith.constant 0 : index
    %c0_30 = arith.constant 0 : index
    %216 = vector.load %arg3[%c0_29, %c0_30] : memref<2x128xf32, #tpu.memory_space<vmem>>, vector<2x128xf32>
    tpu.vector_store %arg3[%c0_29, %c0_30], %215 {strides = array<i32>} : memref<2x128xf32, #tpu.memory_space<vmem>>, vector<2x128xf32>,
    return
  }
  func.func @transform_0(%arg0: i32) -> (i32, i32) {
    %c0_i32 = arith.constant 0 : i32
    %c0_i32_0 = arith.constant 0 : i32
    return %c0_i32, %arg0 : i32, i32
  }
  func.func @transform_1(%arg0: i32) -> (i32, i32) {
    %c0_i32 = arith.constant 0 : i32
    %c0_i32_0 = arith.constant 0 : i32
    return %c0_i32, %arg0 : i32, i32
  }
  func.func @transform_2(%arg0: i32) -> (i32, i32) {
    %c0_i32 = arith.constant 0 : i32
    %c0_i32_0 = arith.constant 0 : i32
    return %c0_i32, %arg0 : i32, i32
  }
}

</mosaic_0001>

<llo_original>
// kernel: tpu_custom_call.1
$region0: #{tpu_custom_call.1}
  #allocation0 [shape = 'u32[]', space=smem, size = 0x4, offset = 0x4, fixed_abs, tag = 'smem constant byte address 0x4 - core index']
  #allocation1 [shape = 'u32[144,128]{1,0:T(1,128)}', space=vmem, size = 0x12000, scoped, tag = 'internal scratch']
  #allocation2 [shape = 'f32[16,128]{1,0:T(8,128)}', space=vmem, size = 0x2000, scoped, tag = 'scratch operand']
  %s0 = inlined_call_operand.hbm [shape: f32[16,128], index: 0, kind: input, shape index: {}]
  %s1 = inlined_call_operand.hbm [shape: f32[16,128], index: 1, kind: input, shape index: {}]
  %s2 = inlined_call_operand.hbm [shape: f32[2,128], index: 2, kind: output, shape index: {}]
  %s3 = sld [smem:[#allocation0]]
  $region26: #{tpu_custom_call.1} parent=0
    _
  %s5 = ssub.s32 1, %s3
  %s6 = scalar_select 0, %s5, %s3
  $region1: #{tpu_custom_call.1} parent=0
    #allocation3 [shape = 'u8[8192]{0}', space=vmem, size = 0x2000, scoped, tag = 'input window, operand 0, single buffered']
    #allocation4 [shape = 's32[1]{0}', space=sflag, size = 0x4, scoped, tag = 'scoped memory for tpu_custom_call.1']
    #allocation5 [shape = 's32[1]{0}', space=sflag, size = 0x4, scoped, tag = 'scoped memory for tpu_custom_call.1']
    #allocation6 [shape = 'u8[8192]{0}', space=vmem, size = 0x2000, scoped, tag = 'input window, operand 1, single buffered']
    #allocation7 [shape = 's32[1]{0}', space=sflag, size = 0x4, scoped, tag = 'scoped memory for tpu_custom_call.1']
    #allocation8 [shape = 'u8[1024]{0}', space=vmem, size = 0x400, scoped, tag = 'output window, operand 0, single buffered']
    %7 = vsyncpa [#allocation4], 0
    %8 = vsyncpa [#allocation7], 0
    %9 = vsyncpa [#allocation5], 0
    // Predicated region
    $region2: #{tpu_custom_call.1} parent=1 // pred_check
      _
    $region3: #{tpu_custom_call.1} parent=1 // pred_check_branch
      %11 = sbr.rel (0) target = $region5
    $region4: #{tpu_custom_call.1} parent=1 // pred_region
      %s13 = ssub.s32 256, 256
      %14 = vsyncadd [#allocation4], %s13
      %s15 = sshll.u32 [#allocation3], 4
      %s16 = int_to_ptr.vmem [resolvable:$true] %s15
      %21 = dma.hbm_to_vmem [thread:$0]  %s0, 256, %s16, [#allocation4], 128, 128, 8
    $region5: #{tpu_custom_call.1} parent=1 // pred_fallthru
      _
    // Predicated region
    $region6: #{tpu_custom_call.1} parent=1 // pred_check
      _
    $region7: #{tpu_custom_call.1} parent=1 // pred_check_branch
      %23 = sbr.rel (0) target = $region9
    $region8: #{tpu_custom_call.1} parent=1 // pred_region
      %s25 = ssub.s32 256, 256
      %26 = vsyncadd [#allocation7], %s25
      %s27 = sshll.u32 [#allocation6], 4
      %s28 = int_to_ptr.vmem [resolvable:$true] %s27
      %33 = dma.hbm_to_vmem [thread:$0]  %s1, 256, %s28, [#allocation7], 128, 128, 8
    $region9: #{tpu_custom_call.1} parent=1 // pred_fallthru
      _
    // Predicated region
    $region10: #{tpu_custom_call.1} parent=1 // pred_check
      _
    $region11: #{tpu_custom_call.1} parent=1 // pred_check_branch
      %35 = sbr.rel (0) target = $region13
    $region12: #{tpu_custom_call.1} parent=1 // pred_region
      %36 = dma.done [#allocation4], 256
    $region13: #{tpu_custom_call.1} parent=1 // pred_fallthru
      _
    // Predicated region
    $region14: #{tpu_custom_call.1} parent=1 // pred_check
      _
    $region15: #{tpu_custom_call.1} parent=1 // pred_check_branch
      %38 = sbr.rel (0) target = $region17
    $region16: #{tpu_custom_call.1} parent=1 // pred_region
      %39 = dma.done [#allocation7], 256
    $region17: #{tpu_custom_call.1} parent=1 // pred_fallthru
      _
    %v40 = vld [vmem:[#allocation3] sm:$0xff]
    %v41 = vld [vmem:[#allocation3 + $0x8] sm:$0xff]
    %v42 = vld [vmem:[#allocation6] sm:$0xff]
    %v43 = vld [vmem:[#allocation6 + $0x8] sm:$0xff]
    %v44 = vsub.f32 %v42, 0.5
    %v45 = vsub.f32 %v43, 0.5
    %v46 = vmul.f32 %v44, 0.05
    %v47 = vmul.f32 %v45, 0.05
    %v48 = vsub.f32 %v40, %v46
    %v49 = vsub.f32 %v41, %v47
    %vm50 = vcmp.gt.f32.partialorder %v42, 0.5
    %vm51 = vcmp.gt.f32.partialorder %v43, 0.5
    %v52 = vsel %vm50, -3e+38, %v48
    %v53 = vsel %vm51, -3e+38, %v49
    %54 = vst [vmem:[#allocation2] sm:$0xff] %v52
    %55 = vst [vmem:[#allocation2 + $0x8] sm:$0xff] %v53
    %v56 = vlaneseq
    %v57 = vshrl.u32 %v56, 7
    %v58 = vadd.s32 %v57, 8
    %v59 = vld [vmem:[#allocation2] sm:$0x1]
    %v60 = vlaneseq
    %v61 = vshrl.u32 %v60, 7
    %v62 = vsub.s32 0, %v61
    %v63 = vrot.slane %v59, %v62
    %vm64 = vcmp.gt.f32.partialorder %v63, %v48
    %vm65 = vcmp.gt.f32.partialorder %v63, %v49
    %vm66 = vcmp.eq.f32.partialorder %v63, %v48
    %vm67 = vcmp.eq.f32.partialorder %v63, %v49
    %vm68 = vcmp.gt.s32.totalorder %v57, 0
    %vm69 = vcmp.gt.s32.totalorder %v58, 0
    %v70 = vsel %vm68, 1, 0
    %v71 = vsel %vm69, 1, 0
    %vm72 = vcmp.eq.s32.totalorder %v70, 1
    %vm73 = vcmp.eq.s32.totalorder %v71, 1
    %vm74 = vmand %vm66, %vm72
    %vm75 = vmand %vm67, %vm73
    %vm76 = vmor %vm64, %vm74
    %vm77 = vmor %vm65, %vm75
    %v78 = vsel %vm76, 1, 0
    %v79 = vsel %vm77, 1, 0
    %v80 = vld [vmem:[#allocation2 + $0x1] sm:$0x1]
    %v81 = vlaneseq
    %v82 = vshrl.u32 %v81, 7
    %v83 = vsub.s32 0, %v82
    %v84 = vrot.slane %v80, %v83
    %vm85 = vcmp.gt.f32.partialorder %v84, %v48
    %vm86 = vcmp.gt.f32.partialorder %v84, %v49
    %vm87 = vcmp.eq.f32.partialorder %v84, %v48
    %vm88 = vcmp.eq.f32.partialorder %v84, %v49
    %vm89 = vcmp.gt.s32.totalorder %v57, 1
    %vm90 = vcmp.gt.s32.totalorder %v58, 1
    %v91 = vsel %vm89, 1, 0
    %v92 = vsel %vm90, 1, 0
    %vm93 = vcmp.eq.s32.totalorder %v91, 1
    %vm94 = vcmp.eq.s32.totalorder %v92, 1
    %vm95 = vmand %vm87, %vm93
    %vm96 = vmand %vm88, %vm94
    %vm97 = vmor %vm85, %vm95
    %vm98 = vmor %vm86, %vm96
    %v99 = vsel %vm97, 1, 0
    %v100 = vsel %vm98, 1, 0
    %v101 = vadd.s32 %v78, %v99
    %v102 = vadd.s32 %v79, %v100
    %v103 = vld [vmem:[#allocation2 + $0x2] sm:$0x1]
    %v104 = vlaneseq
    %v105 = vshrl.u32 %v104, 7
    %v106 = vsub.s32 0, %v105
    %v107 = vrot.slane %v103, %v106
    %vm108 = vcmp.gt.f32.partialorder %v107, %v48
    %vm109 = vcmp.gt.f32.partialorder %v107, %v49
    %vm110 = vcmp.eq.f32.partialorder %v107, %v48
    %vm111 = vcmp.eq.f32.partialorder %v107, %v49
    %vm112 = vcmp.gt.s32.totalorder %v57, 2
    %vm113 = vcmp.gt.s32.totalorder %v58, 2
    %v114 = vsel %vm112, 1, 0
    %v115 = vsel %vm113, 1, 0
    %vm116 = vcmp.eq.s32.totalorder %v114, 1
    %vm117 = vcmp.eq.s32.totalorder %v115, 1
    %vm118 = vmand %vm110, %vm116
    %vm119 = vmand %vm111, %vm117
    %vm120 = vmor %vm108, %vm118
    %vm121 = vmor %vm109, %vm119
    %v122 = vsel %vm120, 1, 0
    %v123 = vsel %vm121, 1, 0
    %v124 = vadd.s32 %v101, %v122
    %v125 = vadd.s32 %v102, %v123
    %v126 = vld [vmem:[#allocation2 + $0x3] sm:$0x1]
    %v127 = vlaneseq
    %v128 = vshrl.u32 %v127, 7
    %v129 = vsub.s32 0, %v128
    %v130 = vrot.slane %v126, %v129
    %vm131 = vcmp.gt.f32.partialorder %v130, %v48
    %vm132 = vcmp.gt.f32.partialorder %v130, %v49
    %vm133 = vcmp.eq.f32.partialorder %v130, %v48
    %vm134 = vcmp.eq.f32.partialorder %v130, %v49
    %vm135 = vcmp.gt.s32.totalorder %v57, 3
    %vm136 = vcmp.gt.s32.totalorder %v58, 3
    %v137 = vsel %vm135, 1, 0
    %v138 = vsel %vm136, 1, 0
    %vm139 = vcmp.eq.s32.totalorder %v137, 1
    %vm140 = vcmp.eq.s32.totalorder %v138, 1
    %vm141 = vmand %vm133, %vm139
    %vm142 = vmand %vm134, %vm140
    %vm143 = vmor %vm131, %vm141
    %vm144 = vmor %vm132, %vm142
    %v145 = vsel %vm143, 1, 0
    %v146 = vsel %vm144, 1, 0
    %v147 = vadd.s32 %v124, %v145
    %v148 = vadd.s32 %v125, %v146
    %v149 = vld [vmem:[#allocation2 + $0x4] sm:$0x1]
    %v150 = vlaneseq
    %v151 = vshrl.u32 %v150, 7
    %v152 = vsub.s32 0, %v151
    %v153 = vrot.slane %v149, %v152
    %vm154 = vcmp.gt.f32.partialorder %v153, %v48
    %vm155 = vcmp.gt.f32.partialorder %v153, %v49
    %vm156 = vcmp.eq.f32.partialorder %v153, %v48
    %vm157 = vcmp.eq.f32.partialorder %v153, %v49
    %vm158 = vcmp.gt.s32.totalorder %v57, 4
    %vm159 = vcmp.gt.s32.totalorder %v58, 4
    %v160 = vsel %vm158, 1, 0
    %v161 = vsel %vm159, 1, 0
    %vm162 = vcmp.eq.s32.totalorder %v160, 1
    %vm163 = vcmp.eq.s32.totalorder %v161, 1
    %vm164 = vmand %vm156, %vm162
    %vm165 = vmand %vm157, %vm163
    %vm166 = vmor %vm154, %vm164
    %vm167 = vmor %vm155, %vm165
    %v168 = vsel %vm166, 1, 0
    %v169 = vsel %vm167, 1, 0
    %v170 = vadd.s32 %v147, %v168
    %v171 = vadd.s32 %v148, %v169
    %v172 = vld [vmem:[#allocation2 + $0x5] sm:$0x1]
    %v173 = vlaneseq
    %v174 = vshrl.u32 %v173, 7
    %v175 = vsub.s32 0, %v174
    %v176 = vrot.slane %v172, %v175
    %vm177 = vcmp.gt.f32.partialorder %v176, %v48
    %vm178 = vcmp.gt.f32.partialorder %v176, %v49
    %vm179 = vcmp.eq.f32.partialorder %v176, %v48
    %vm180 = vcmp.eq.f32.partialorder %v176, %v49
    %vm181 = vcmp.gt.s32.totalorder %v57, 5
    %vm182 = vcmp.gt.s32.totalorder %v58, 5
    %v183 = vsel %vm181, 1, 0
    %v184 = vsel %vm182, 1, 0
    %vm185 = vcmp.eq.s32.totalorder %v183, 1
    %vm186 = vcmp.eq.s32.totalorder %v184, 1
    %vm187 = vmand %vm179, %vm185
    %vm188 = vmand %vm180, %vm186
    %vm189 = vmor %vm177, %vm187
    %vm190 = vmor %vm178, %vm188
    %v191 = vsel %vm189, 1, 0
    %v192 = vsel %vm190, 1, 0
    %v193 = vadd.s32 %v170, %v191
    %v194 = vadd.s32 %v171, %v192
    %v195 = vld [vmem:[#allocation2 + $0x6] sm:$0x1]
    %v196 = vlaneseq
    %v197 = vshrl.u32 %v196, 7
    %v198 = vsub.s32 0, %v197
    %v199 = vrot.slane %v195, %v198
    %vm200 = vcmp.gt.f32.partialorder %v199, %v48
    %vm201 = vcmp.gt.f32.partialorder %v199, %v49
    %vm202 = vcmp.eq.f32.partialorder %v199, %v48
    %vm203 = vcmp.eq.f32.partialorder %v199, %v49
    %vm204 = vcmp.gt.s32.totalorder %v57, 6
    %vm205 = vcmp.gt.s32.totalorder %v58, 6
    %v206 = vsel %vm204, 1, 0
    %v207 = vsel %vm205, 1, 0
    %vm208 = vcmp.eq.s32.totalorder %v206, 1
    %vm209 = vcmp.eq.s32.totalorder %v207, 1
    %vm210 = vmand %vm202, %vm208
    %vm211 = vmand %vm203, %vm209
    %vm212 = vmor %vm200, %vm210
    %vm213 = vmor %vm201, %vm211
    %v214 = vsel %vm212, 1, 0
    %v215 = vsel %vm213, 1, 0
    %v216 = vadd.s32 %v193, %v214
    %v217 = vadd.s32 %v194, %v215
    %v218 = vld [vmem:[#allocation2 + $0x7] sm:$0x1]
    %v219 = vlaneseq
    %v220 = vshrl.u32 %v219, 7
    %v221 = vsub.s32 0, %v220
    %v222 = vrot.slane %v218, %v221
    %vm223 = vcmp.gt.f32.partialorder %v222, %v48
    %vm224 = vcmp.gt.f32.partialorder %v222, %v49
    %vm225 = vcmp.eq.f32.partialorder %v222, %v48
    %vm226 = vcmp.eq.f32.partialorder %v222, %v49
    %vm227 = vcmp.gt.s32.totalorder %v57, 7
    %vm228 = vcmp.gt.s32.totalorder %v58, 7
    %v229 = vsel %vm227, 1, 0
    %v230 = vsel %vm228, 1, 0
    %vm231 = vcmp.eq.s32.totalorder %v229, 1
    %vm232 = vcmp.eq.s32.totalorder %v230, 1
    %vm233 = vmand %vm225, %vm231
    %vm234 = vmand %vm226, %vm232
    %vm235 = vmor %vm223, %vm233
    %vm236 = vmor %vm224, %vm234
    %v237 = vsel %vm235, 1, 0
    %v238 = vsel %vm236, 1, 0
    %v239 = vadd.s32 %v216, %v237
    %v240 = vadd.s32 %v217, %v238
    %v241 = vld [vmem:[#allocation2 + $0x8] sm:$0x1]
    %v242 = vlaneseq
    %v243 = vshrl.u32 %v242, 7
    %v244 = vsub.s32 0, %v243
    %v245 = vrot.slane %v241, %v244
    %vm246 = vcmp.gt.f32.partialorder %v245, %v48
    %vm247 = vcmp.gt.f32.partialorder %v245, %v49
    %vm248 = vcmp.eq.f32.partialorder %v245, %v48
    %vm249 = vcmp.eq.f32.partialorder %v245, %v49
    %vm250 = vcmp.gt.s32.totalorder %v57, 8
    %vm251 = vcmp.gt.s32.totalorder %v58, 8
    %v252 = vsel %vm250, 1, 0
    %v253 = vsel %vm251, 1, 0
    %vm254 = vcmp.eq.s32.totalorder %v252, 1
    %vm255 = vcmp.eq.s32.totalorder %v253, 1
    %vm256 = vmand %vm248, %vm254
    %vm257 = vmand %vm249, %vm255
    %vm258 = vmor %vm246, %vm256
    %vm259 = vmor %vm247, %vm257
    %v260 = vsel %vm258, 1, 0
    %v261 = vsel %vm259, 1, 0
    %v262 = vadd.s32 %v239, %v260
    %v263 = vadd.s32 %v240, %v261
    %v264 = vld [vmem:[#allocation2 + $0x9] sm:$0x1]
    %v265 = vlaneseq
    %v266 = vshrl.u32 %v265, 7
    %v267 = vsub.s32 0, %v266
    %v268 = vrot.slane %v264, %v267
    %vm269 = vcmp.gt.f32.partialorder %v268, %v48
    %vm270 = vcmp.gt.f32.partialorder %v268, %v49
    %vm271 = vcmp.eq.f32.partialorder %v268, %v48
    %vm272 = vcmp.eq.f32.partialorder %v268, %v49
    %vm273 = vcmp.gt.s32.totalorder %v57, 9
    %vm274 = vcmp.gt.s32.totalorder %v58, 9
    %v275 = vsel %vm273, 1, 0
    %v276 = vsel %vm274, 1, 0
    %vm277 = vcmp.eq.s32.totalorder %v275, 1
    %vm278 = vcmp.eq.s32.totalorder %v276, 1
    %vm279 = vmand %vm271, %vm277
    %vm280 = vmand %vm272, %vm278
    %vm281 = vmor %vm269, %vm279
    %vm282 = vmor %vm270, %vm280
    %v283 = vsel %vm281, 1, 0
    %v284 = vsel %vm282, 1, 0
    %v285 = vadd.s32 %v262, %v283
    %v286 = vadd.s32 %v263, %v284
    %v287 = vld [vmem:[#allocation2 + $0xa] sm:$0x1]
    %v288 = vlaneseq
    %v289 = vshrl.u32 %v288, 7
    %v290 = vsub.s32 0, %v289
    %v291 = vrot.slane %v287, %v290
    %vm292 = vcmp.gt.f32.partialorder %v291, %v48
    %vm293 = vcmp.gt.f32.partialorder %v291, %v49
    %vm294 = vcmp.eq.f32.partialorder %v291, %v48
    %vm295 = vcmp.eq.f32.partialorder %v291, %v49
    %vm296 = vcmp.gt.s32.totalorder %v57, 10
    %vm297 = vcmp.gt.s32.totalorder %v58, 10
    %v298 = vsel %vm296, 1, 0
    %v299 = vsel %vm297, 1, 0
    %vm300 = vcmp.eq.s32.totalorder %v298, 1
    %vm301 = vcmp.eq.s32.totalorder %v299, 1
    %vm302 = vmand %vm294, %vm300
    %vm303 = vmand %vm295, %vm301
    %vm304 = vmor %vm292, %vm302
    %vm305 = vmor %vm293, %vm303
    %v306 = vsel %vm304, 1, 0
    %v307 = vsel %vm305, 1, 0
    %v308 = vadd.s32 %v285, %v306
    %v309 = vadd.s32 %v286, %v307
    %v310 = vld [vmem:[#allocation2 + $0xb] sm:$0x1]
    %v311 = vlaneseq
    %v312 = vshrl.u32 %v311, 7
    %v313 = vsub.s32 0, %v312
    %v314 = vrot.slane %v310, %v313
    %vm315 = vcmp.gt.f32.partialorder %v314, %v48
    %vm316 = vcmp.gt.f32.partialorder %v314, %v49
    %vm317 = vcmp.eq.f32.partialorder %v314, %v48
    %vm318 = vcmp.eq.f32.partialorder %v314, %v49
    %vm319 = vcmp.gt.s32.totalorder %v57, 11
    %vm320 = vcmp.gt.s32.totalorder %v58, 11
    %v321 = vsel %vm319, 1, 0
    %v322 = vsel %vm320, 1, 0
    %vm323 = vcmp.eq.s32.totalorder %v321, 1
    %vm324 = vcmp.eq.s32.totalorder %v322, 1
    %vm325 = vmand %vm317, %vm323
    %vm326 = vmand %vm318, %vm324
    %vm327 = vmor %vm315, %vm325
    %vm328 = vmor %vm316, %vm326
    %v329 = vsel %vm327, 1, 0
    %v330 = vsel %vm328, 1, 0
    %v331 = vadd.s32 %v308, %v329
    %v332 = vadd.s32 %v309, %v330
    %v333 = vld [vmem:[#allocation2 + $0xc] sm:$0x1]
    %v334 = vlaneseq
    %v335 = vshrl.u32 %v334, 7
    %v336 = vsub.s32 0, %v335
    %v337 = vrot.slane %v333, %v336
    %vm338 = vcmp.gt.f32.partialorder %v337, %v48
    %vm339 = vcmp.gt.f32.partialorder %v337, %v49
    %vm340 = vcmp.eq.f32.partialorder %v337, %v48
    %vm341 = vcmp.eq.f32.partialorder %v337, %v49
    %vm342 = vcmp.gt.s32.totalorder %v57, 12
    %vm343 = vcmp.gt.s32.totalorder %v58, 12
    %v344 = vsel %vm342, 1, 0
    %v345 = vsel %vm343, 1, 0
    %vm346 = vcmp.eq.s32.totalorder %v344, 1
    %vm347 = vcmp.eq.s32.totalorder %v345, 1
    %vm348 = vmand %vm340, %vm346
    %vm349 = vmand %vm341, %vm347
    %vm350 = vmor %vm338, %vm348
    %vm351 = vmor %vm339, %vm349
    %v352 = vsel %vm350, 1, 0
    %v353 = vsel %vm351, 1, 0
    %v354 = vadd.s32 %v331, %v352
    %v355 = vadd.s32 %v332, %v353
    %v356 = vld [vmem:[#allocation2 + $0xd] sm:$0x1]
    %v357 = vlaneseq
    %v358 = vshrl.u32 %v357, 7
    %v359 = vsub.s32 0, %v358
    %v360 = vrot.slane %v356, %v359
    %vm361 = vcmp.gt.f32.partialorder %v360, %v48
    %vm362 = vcmp.gt.f32.partialorder %v360, %v49
    %vm363 = vcmp.eq.f32.partialorder %v360, %v48
    %vm364 = vcmp.eq.f32.partialorder %v360, %v49
    %vm365 = vcmp.gt.s32.totalorder %v57, 13
    %vm366 = vcmp.gt.s32.totalorder %v58, 13
    %v367 = vsel %vm365, 1, 0
    %v368 = vsel %vm366, 1, 0
    %vm369 = vcmp.eq.s32.totalorder %v367, 1
    %vm370 = vcmp.eq.s32.totalorder %v368, 1
    %vm371 = vmand %vm363, %vm369
    %vm372 = vmand %vm364, %vm370
    %vm373 = vmor %vm361, %vm371
    %vm374 = vmor %vm362, %vm372
    %v375 = vsel %vm373, 1, 0
    %v376 = vsel %vm374, 1, 0
    %v377 = vadd.s32 %v354, %v375
    %v378 = vadd.s32 %v355, %v376
    %v379 = vld [vmem:[#allocation2 + $0xe] sm:$0x1]
    %v380 = vlaneseq
    %v381 = vshrl.u32 %v380, 7
    %v382 = vsub.s32 0, %v381
    %v383 = vrot.slane %v379, %v382
    %vm384 = vcmp.gt.f32.partialorder %v383, %v48
    %vm385 = vcmp.gt.f32.partialorder %v383, %v49
    %vm386 = vcmp.eq.f32.partialorder %v383, %v48
    %vm387 = vcmp.eq.f32.partialorder %v383, %v49
    %vm388 = vcmp.gt.s32.totalorder %v57, 14
    %vm389 = vcmp.gt.s32.totalorder %v58, 14
    %v390 = vsel %vm388, 1, 0
    %v391 = vsel %vm389, 1, 0
    %vm392 = vcmp.eq.s32.totalorder %v390, 1
    %vm393 = vcmp.eq.s32.totalorder %v391, 1
    %vm394 = vmand %vm386, %vm392
    %vm395 = vmand %vm387, %vm393
    %vm396 = vmor %vm384, %vm394
    %vm397 = vmor %vm385, %vm395
    %v398 = vsel %vm396, 1, 0
    %v399 = vsel %vm397, 1, 0
    %v400 = vadd.s32 %v377, %v398
    %v401 = vadd.s32 %v378, %v399
    %v402 = vld [vmem:[#allocation2 + $0xf] sm:$0x1]
    %v403 = vlaneseq
    %v404 = vshrl.u32 %v403, 7
    %v405 = vsub.s32 0, %v404
    %v406 = vrot.slane %v402, %v405
    %vm407 = vcmp.gt.f32.partialorder %v406, %v48
    %vm408 = vcmp.gt.f32.partialorder %v406, %v49
    %vm409 = vcmp.eq.f32.partialorder %v406, %v48
    %vm410 = vcmp.eq.f32.partialorder %v406, %v49
    %vm411 = vcmp.gt.s32.totalorder %v57, 15
    %vm412 = vcmp.gt.s32.totalorder %v58, 15
    %v413 = vsel %vm411, 1, 0
    %v414 = vsel %vm412, 1, 0
    %vm415 = vcmp.eq.s32.totalorder %v413, 1
    %vm416 = vcmp.eq.s32.totalorder %v414, 1
    %vm417 = vmand %vm409, %vm415
    %vm418 = vmand %vm410, %vm416
    %vm419 = vmor %vm407, %vm417
    %vm420 = vmor %vm408, %vm418
    %v421 = vsel %vm419, 1, 0
    %v422 = vsel %vm420, 1, 0
    %v423 = vadd.s32 %v400, %v421
    %v424 = vadd.s32 %v401, %v422
    %v425 = vcvt.s32.f32 %v423
    %v426 = vcvt.s32.f32 %v424
    %v427 = vmul.f32 %v425, 0.5
    %v428 = vmul.f32 %v426, 0.5
    %v429 = vmul.f32 %v427, %v42
    %v430 = vmul.f32 %v428, %v43
    %v431 = vadd.f32 %v429, 1.0
    %v432 = vlog2.pop %v431
    %v433 = vmul.f32 %v432, 0.6931472
    %v434 = vmul.f32 -0.5, %v429
    %v435 = vadd.f32 %v434, 1.0
    %v436 = vmul.f32 %v435, %v429
    %v437 = vand.u32 2147483647, %v429
    %vm438 = vcmp.lt.f32.partialorder %v437, 0.0004427343
    %v439 = vsel %vm438, %v436, %v433
    %v440 = vadd.f32 %v430, 1.0
    %v441 = vlog2.pop %v440
    %v442 = vmul.f32 %v441, 0.6931472
    %v443 = vmul.f32 -0.5, %v430
    %v444 = vadd.f32 %v443, 1.0
    %v445 = vmul.f32 %v444, %v430
    %v446 = vand.u32 2147483647, %v430
    %vm447 = vcmp.lt.f32.partialorder %v446, 0.0004427343
    %v448 = vsel %vm447, %v445, %v442
    %v449 = vadd.f32 %v439, %v448
    %v450 = vrot.slane %v449, 4
    %v451 = vadd.f32 %v449, %v450
    %v452 = vrot.slane %v451, 2
    %v453 = vadd.f32 %v451, %v452
    %v454 = vrot.slane %v453, 1
    %v455 = vadd.f32 %v453, %v454
    %v456 = vadd.f32 %v42, %v43
    %v457 = vrot.slane %v456, 4
    %v458 = vadd.f32 %v456, %v457
    %v459 = vrot.slane %v458, 2
    %v460 = vadd.f32 %v458, %v459
    %v461 = vrot.slane %v460, 1
    %v462 = vadd.f32 %v460, %v461
    %vm463 = vcmask 1040384
    %v464 = vsel %vm463, %v455, %v462
    %465 = vst [vmem:[#allocation8] sm:$0x3] %v464
    // Predicated region
    $region18: #{tpu_custom_call.1} parent=1 // pred_check
      _
    $region19: #{tpu_custom_call.1} parent=1 // pred_check_branch
      %467 = sbr.rel (0) target = $region21
    $region20: #{tpu_custom_call.1} parent=1 // pred_region
      %s469 = ssub.s32 32, 32
      %470 = vsyncadd [#allocation5], %s469
      %s472 = sshll.u32 [#allocation8], 4
      %s473 = int_to_ptr.vmem [resolvable:$true] %s472
      %475 = dma.vmem_to_hbm [thread:$0]  %s473, 32, %s2, [#allocation5]
    $region21: #{tpu_custom_call.1} parent=1 // pred_fallthru
      _
    // Predicated region
    $region22: #{tpu_custom_call.1} parent=1 // pred_check
      _
    $region23: #{tpu_custom_call.1} parent=1 // pred_check_branch
      %477 = sbr.rel (0) target = $region25
    $region24: #{tpu_custom_call.1} parent=1 // pred_region
      %478 = dma.done [#allocation5], 32
    $region25: #{tpu_custom_call.1} parent=1 // pred_fallthru
      _
    %479 = vsyncpa [#allocation4], 1
    %480 = vsyncpa [#allocation7], 1
    %481 = vsyncpa [#allocation5], 1

</llo_original>
